<compile_context>
chip_gen: v5e
topology: v5e:2x2
jax: 0.10.0
libtpu: 0.0.40
codegen_flags: <defaults>
</compile_context>

<pallas_src>
import jax
import jax.numpy as jnp
from jax.experimental import pallas as pl
from jax.experimental.pallas import tpu as pltpu


def _ode_euler_kernel(x_ref,      # VMEM (C, L)     f32, L = lane-padded B*T
                      w1t_ref,    # VMEM (H, C)     = W1^T
                      w2t_ref,    # VMEM (C, H)     = W2^T
                      emb_ref,    # VMEM (S, H, 1)  = b1 + t_span[s]*wt
                      mc_ref,     # VMEM (2, C, L)  = [mask*dt, b2*mask*dt]
                      out_ref):   # VMEM (C, L)     (aliased with x in HBM)
    S = emb_ref.shape[0]

    w1t = w1t_ref[...]
    w2t = w2t_ref[...]
    mask_dt = mc_ref[0]           # (C, L)
    const_add = mc_ref[1]         # (C, L)

    x = x_ref[...]                # (C, L) -- whole batch in lanes
    # Static unroll over ODE steps (S is tiny): straight-line code so MXU
    # pushes / EUP tanh / VPU fmas of adjacent steps can interleave.  The
    # step-to-step dependence chain itself is inherently serial.
    for s in range(S):
        # velocity field: per-timestep MLP, time embedding lane-broadcast
        h = jnp.tanh(
            jnp.dot(w1t, x, preferred_element_type=jnp.float32)
            + emb_ref[s])                                   # (H, L)
        # Euler update with conditioning mask and dt folded in:
        #   x += (h @ W2) * mask * dt + b2 * mask * dt
        x = x + jnp.dot(w2t, h,
                        preferred_element_type=jnp.float32) * mask_dt \
              + const_add                                   # (C, L)
    out_ref[...] = x


def conditioned_ode_solve(x_bct, t_span, params, cond_mask_tc):
    """x_bct: (B, C, T) f32, t_span: (S,) f32, cond_mask_tc: (T, C) -> (B, C, T)."""
    B, C, T = x_bct.shape
    H = params["w1"].shape[1]
    S = t_span.shape[0]

    t_span = t_span.astype(jnp.float32)
    dt = t_span[1] - t_span[0]

    # ---- Fold batch into lanes, pad lanes to a 128 multiple (lane-dense). ----
    L0 = B * T
    L = ((L0 + 127) // 128) * 128
    x_slab = jnp.transpose(x_bct.astype(jnp.float32), (1, 0, 2)).reshape(C, L0)
    x_slab = jnp.pad(x_slab, ((0, 0), (0, L - L0)))            # (C, L)

    # ---- One-time O(C*H) / O(S*H) precompute of loop invariants. ----
    w1t = params["w1"].T.astype(jnp.float32)                   # (H, C)
    w2t = params["w2"].T.astype(jnp.float32)                   # (C, H)
    emb = (params["b1"] + t_span[:, None] * params["wt"])      # (S, H)
    emb = emb.astype(jnp.float32).reshape(S, H, 1)             # lane-broadcast in kernel

    mask_ct = cond_mask_tc.T.astype(jnp.float32)               # (C, T)
    mask_slab = jnp.broadcast_to(mask_ct[:, None, :], (C, B, T)).reshape(C, L0)
    mask_slab = jnp.pad(mask_slab, ((0, 0), (0, L - L0)))      # pad lanes masked out
    mask_dt = mask_slab * dt                                   # (C, L)
    const_add = params["b2"].reshape(C, 1).astype(jnp.float32) * mask_dt
    mc = jnp.stack([mask_dt, const_add], axis=0)               # (2, C, L)

    out_slab = pl.pallas_call(
        _ode_euler_kernel,
        out_shape=jax.ShapeDtypeStruct((C, L), jnp.float32),
        grid=(1,),                                             # single invocation
        in_specs=[
            pl.BlockSpec((C, L), lambda i: (0, 0)),            # x slab (lane-dense)
            pl.BlockSpec((H, C), lambda i: (0, 0)),            # W1^T
            pl.BlockSpec((C, H), lambda i: (0, 0)),            # W2^T
            pl.BlockSpec((S, H, 1), lambda i: (0, 0, 0)),      # time embedding
            pl.BlockSpec((2, C, L), lambda i: (0, 0, 0)),      # packed mask/const
        ],
        out_specs=pl.BlockSpec((C, L), lambda i: (0, 0)),
        input_output_aliases={0: 0},                           # x slab -> output
        compiler_params=pltpu.CompilerParams(
            dimension_semantics=("arbitrary",)),
    )(x_slab, w1t, w2t, emb, mc)

    # Unfold lanes back to (B, C, T).
    return jnp.transpose(out_slab[:, :L0].reshape(C, B, T), (1, 0, 2))


def reference(x_bct, t_span, params, cond_mask_tc):
    """Pure-JAX reference mirroring the PyTorch loop."""
    x = jnp.transpose(x_bct, (0, 2, 1)).astype(jnp.float32)    # (B, T, C)
    dt = t_span[1] - t_span[0]
    for t in t_span:
        h = jnp.tanh(x @ params["w1"] + params["b1"] + t * params["wt"])
        dx = (h @ params["w2"] + params["b2"]) * cond_mask_tc
        x = x + dx * dt
    return jnp.transpose(x, (0, 2, 1))


if __name__ == "__main__":
    # Shapes implied by the forward: x (B, C, T), t_span (S,)
    B, T = 2, 16
    action_dim, obs_dim = 2, 4
    C = action_dim + obs_dim
    H = 32
    S = 9

    key = jax.random.PRNGKey(0)
    kx, k1, k2, k3, k4, k5 = jax.random.split(key, 6)

    x = jax.random.normal(kx, (B, C, T), dtype=jnp.float32)
    t_span = jnp.linspace(0.0, 1.0, S, dtype=jnp.float32)

    params = {
        "w1": 0.2 * jax.random.normal(k1, (C, H), dtype=jnp.float32),
        "b1": 0.1 * jax.random.normal(k2, (1, H), dtype=jnp.float32),
        "wt": 0.1 * jax.random.normal(k3, (1, H), dtype=jnp.float32),
        "w2": 0.2 * jax.random.normal(k4, (H, C), dtype=jnp.float32),
        "b2": 0.1 * jax.random.normal(k5, (1, C), dtype=jnp.float32),
    }

    # conditions: condition trajectory index 0 (typical "start state" condition)
    conditions = {0}
    cond_mask = jnp.ones((T, C), dtype=jnp.float32)
    for t_idx in conditions:
        cond_mask = cond_mask.at[t_idx, action_dim:].set(0.0)

    solve = jax.jit(conditioned_ode_solve)
    out = jax.block_until_ready(solve(x, t_span, params, cond_mask))

    ref = reference(x, t_span, params, cond_mask)
    assert out.shape == x.shape and out.dtype == jnp.float32
    assert bool(jnp.all(jnp.isfinite(out)))
    assert bool(jnp.allclose(out, ref, rtol=1e-3, atol=1e-3)), (
        float(jnp.max(jnp.abs(out - ref))))

    print("KERNEL_OK")
</pallas_src>

<mosaic_0001>
module attributes {stable_mosaic.version = 11 : i64} {
  func.func @_ode_euler_kernel(%arg0: i32, %arg1: memref<6x128xf32, #tpu.memory_space<vmem>>, %arg2: memref<32x6xf32, #tpu.memory_space<vmem>>, %arg3: memref<6x32xf32, #tpu.memory_space<vmem>>, %arg4: memref<9x32x1xf32, #tpu.memory_space<vmem>>, %arg5: memref<2x6x128xf32, #tpu.memory_space<vmem>>, %arg6: memref<6x128xf32, #tpu.memory_space<vmem>>) attributes {dimension_semantics = [#tpu.dimension_semantics<arbitrary>], iteration_bounds = array<i64: 1>, scalar_prefetch = 0 : i64, scratch_operands = 0 : i64, tpu.core_type = #tpu.core_type<tc>, window_params = [{pipeline_mode = #tpu.pipeline_mode<synchronous>, transform_indices = @transform_0, window_bounds = array<i64: 6, 128>}, {pipeline_mode = #tpu.pipeline_mode<synchronous>, transform_indices = @transform_1, window_bounds = array<i64: 32, 6>}, {pipeline_mode = #tpu.pipeline_mode<synchronous>, transform_indices = @transform_2, window_bounds = array<i64: 6, 32>}, {pipeline_mode = #tpu.pipeline_mode<synchronous>, transform_indices = @transform_3, window_bounds = array<i64: 9, 32, 1>}, {pipeline_mode = #tpu.pipeline_mode<synchronous>, transform_indices = @transform_4, window_bounds = array<i64: 2, 6, 128>}, {pipeline_mode = #tpu.pipeline_mode<synchronous>, transform_indices = @transform_5, window_bounds = array<i64: 6, 128>}]} {
    %c0 = arith.constant 0 : index
    %c0_0 = arith.constant 0 : index
    %0 = vector.load %arg2[%c0, %c0_0] : memref<32x6xf32, #tpu.memory_space<vmem>>, vector<32x6xf32>
    %c0_1 = arith.constant 0 : index
    %c0_2 = arith.constant 0 : index
    %1 = vector.load %arg3[%c0_1, %c0_2] : memref<6x32xf32, #tpu.memory_space<vmem>>, vector<6x32xf32>
    %c0_3 = arith.constant 0 : index
    %c0_4 = arith.constant 0 : index
    %c0_5 = arith.constant 0 : index
    %2 = vector.load %arg5[%c0_3, %c0_4, %c0_5] : memref<2x6x128xf32, #tpu.memory_space<vmem>>, vector<1x6x128xf32>
    %3 = vector.shape_cast %2 : vector<1x6x128xf32> to vector<6x128xf32>
    %c1 = arith.constant 1 : index
    %c0_6 = arith.constant 0 : index
    %c0_7 = arith.constant 0 : index
    %4 = vector.load %arg5[%c1, %c0_6, %c0_7] : memref<2x6x128xf32, #tpu.memory_space<vmem>>, vector<1x6x128xf32>
    %5 = vector.shape_cast %4 : vector<1x6x128xf32> to vector<6x128xf32>
    %c0_8 = arith.constant 0 : index
    %c0_9 = arith.constant 0 : index
    %6 = vector.load %arg1[%c0_8, %c0_9] : memref<6x128xf32, #tpu.memory_space<vmem>>, vector<6x128xf32>
    %cst = arith.constant dense<0.000000e+00> : vector<32x128xf32>
    %7 = tpu.matmul %0, %6, %cst {dimension_numbers = #tpu.dot_dimension_numbers<[1], [0], [0], [1], [0, 0, 1, 1], [], []>} : vector<32x6xf32>, vector<6x128xf32>, vector<32x128xf32> -> vector<32x128xf32>
    %c0_10 = arith.constant 0 : index
    %c0_11 = arith.constant 0 : index
    %c0_12 = arith.constant 0 : index
    %8 = vector.load %arg4[%c0_10, %c0_11, %c0_12] : memref<9x32x1xf32, #tpu.memory_space<vmem>>, vector<1x32x1xf32>
    %9 = vector.shape_cast %8 : vector<1x32x1xf32> to vector<32x1xf32>
    %10 = vector.broadcast %9 : vector<32x1xf32> to vector<32x128xf32>
    %11 = arith.addf %7, %10 : vector<32x128xf32>
    %12 = math.tanh %11 : vector<32x128xf32>
    %cst_13 = arith.constant dense<0.000000e+00> : vector<6x128xf32>
    %13 = tpu.matmul %1, %12, %cst_13 {dimension_numbers = #tpu.dot_dimension_numbers<[1], [0], [0], [1], [0, 0, 1, 1], [], []>} : vector<6x32xf32>, vector<32x128xf32>, vector<6x128xf32> -> vector<6x128xf32>
    %14 = arith.mulf %13, %3 : vector<6x128xf32>
    %15 = arith.addf %6, %14 : vector<6x128xf32>
    %16 = arith.addf %15, %5 : vector<6x128xf32>
    %cst_14 = arith.constant dense<0.000000e+00> : vector<32x128xf32>
    %17 = tpu.matmul %0, %16, %cst_14 {dimension_numbers = #tpu.dot_dimension_numbers<[1], [0], [0], [1], [0, 0, 1, 1], [], []>} : vector<32x6xf32>, vector<6x128xf32>, vector<32x128xf32> -> vector<32x128xf32>
    %c1_15 = arith.constant 1 : index
    %c0_16 = arith.constant 0 : index
    %c0_17 = arith.constant 0 : index
    %18 = vector.load %arg4[%c1_15, %c0_16, %c0_17] : memref<9x32x1xf32, #tpu.memory_space<vmem>>, vector<1x32x1xf32>
    %19 = vector.shape_cast %18 : vector<1x32x1xf32> to vector<32x1xf32>
    %20 = vector.broadcast %19 : vector<32x1xf32> to vector<32x128xf32>
    %21 = arith.addf %17, %20 : vector<32x128xf32>
    %22 = math.tanh %21 : vector<32x128xf32>
    %cst_18 = arith.constant dense<0.000000e+00> : vector<6x128xf32>
    %23 = tpu.matmul %1, %22, %cst_18 {dimension_numbers = #tpu.dot_dimension_numbers<[1], [0], [0], [1], [0, 0, 1, 1], [], []>} : vector<6x32xf32>, vector<32x128xf32>, vector<6x128xf32> -> vector<6x128xf32>
    %24 = arith.mulf %23, %3 : vector<6x128xf32>
    %25 = arith.addf %16, %24 : vector<6x128xf32>
    %26 = arith.addf %25, %5 : vector<6x128xf32>
    %cst_19 = arith.constant dense<0.000000e+00> : vector<32x128xf32>
    %27 = tpu.matmul %0, %26, %cst_19 {dimension_numbers = #tpu.dot_dimension_numbers<[1], [0], [0], [1], [0, 0, 1, 1], [], []>} : vector<32x6xf32>, vector<6x128xf32>, vector<32x128xf32> -> vector<32x128xf32>
    %c2 = arith.constant 2 : index
    %c0_20 = arith.constant 0 : index
    %c0_21 = arith.constant 0 : index
    %28 = vector.load %arg4[%c2, %c0_20, %c0_21] : memref<9x32x1xf32, #tpu.memory_space<vmem>>, vector<1x32x1xf32>
    %29 = vector.shape_cast %28 : vector<1x32x1xf32> to vector<32x1xf32>
    %30 = vector.broadcast %29 : vector<32x1xf32> to vector<32x128xf32>
    %31 = arith.addf %27, %30 : vector<32x128xf32>
    %32 = math.tanh %31 : vector<32x128xf32>
    %cst_22 = arith.constant dense<0.000000e+00> : vector<6x128xf32>
    %33 = tpu.matmul %1, %32, %cst_22 {dimension_numbers = #tpu.dot_dimension_numbers<[1], [0], [0], [1], [0, 0, 1, 1], [], []>} : vector<6x32xf32>, vector<32x128xf32>, vector<6x128xf32> -> vector<6x128xf32>
    %34 = arith.mulf %33, %3 : vector<6x128xf32>
    %35 = arith.addf %26, %34 : vector<6x128xf32>
    %36 = arith.addf %35, %5 : vector<6x128xf32>
    %cst_23 = arith.constant dense<0.000000e+00> : vector<32x128xf32>
    %37 = tpu.matmul %0, %36, %cst_23 {dimension_numbers = #tpu.dot_dimension_numbers<[1], [0], [0], [1], [0, 0, 1, 1], [], []>} : vector<32x6xf32>, vector<6x128xf32>, vector<32x128xf32> -> vector<32x128xf32>
    %c3 = arith.constant 3 : index
    %c0_24 = arith.constant 0 : index
    %c0_25 = arith.constant 0 : index
    %38 = vector.load %arg4[%c3, %c0_24, %c0_25] : memref<9x32x1xf32, #tpu.memory_space<vmem>>, vector<1x32x1xf32>
    %39 = vector.shape_cast %38 : vector<1x32x1xf32> to vector<32x1xf32>
    %40 = vector.broadcast %39 : vector<32x1xf32> to vector<32x128xf32>
    %41 = arith.addf %37, %40 : vector<32x128xf32>
    %42 = math.tanh %41 : vector<32x128xf32>
    %cst_26 = arith.constant dense<0.000000e+00> : vector<6x128xf32>
    %43 = tpu.matmul %1, %42, %cst_26 {dimension_numbers = #tpu.dot_dimension_numbers<[1], [0], [0], [1], [0, 0, 1, 1], [], []>} : vector<6x32xf32>, vector<32x128xf32>, vector<6x128xf32> -> vector<6x128xf32>
    %44 = arith.mulf %43, %3 : vector<6x128xf32>
    %45 = arith.addf %36, %44 : vector<6x128xf32>
    %46 = arith.addf %45, %5 : vector<6x128xf32>
    %cst_27 = arith.constant dense<0.000000e+00> : vector<32x128xf32>
    %47 = tpu.matmul %0, %46, %cst_27 {dimension_numbers = #tpu.dot_dimension_numbers<[1], [0], [0], [1], [0, 0, 1, 1], [], []>} : vector<32x6xf32>, vector<6x128xf32>, vector<32x128xf32> -> vector<32x128xf32>
    %c4 = arith.constant 4 : index
    %c0_28 = arith.constant 0 : index
    %c0_29 = arith.constant 0 : index
    %48 = vector.load %arg4[%c4, %c0_28, %c0_29] : memref<9x32x1xf32, #tpu.memory_space<vmem>>, vector<1x32x1xf32>
    %49 = vector.shape_cast %48 : vector<1x32x1xf32> to vector<32x1xf32>
    %50 = vector.broadcast %49 : vector<32x1xf32> to vector<32x128xf32>
    %51 = arith.addf %47, %50 : vector<32x128xf32>
    %52 = math.tanh %51 : vector<32x128xf32>
    %cst_30 = arith.constant dense<0.000000e+00> : vector<6x128xf32>
    %53 = tpu.matmul %1, %52, %cst_30 {dimension_numbers = #tpu.dot_dimension_numbers<[1], [0], [0], [1], [0, 0, 1, 1], [], []>} : vector<6x32xf32>, vector<32x128xf32>, vector<6x128xf32> -> vector<6x128xf32>
    %54 = arith.mulf %53, %3 : vector<6x128xf32>
    %55 = arith.addf %46, %54 : vector<6x128xf32>
    %56 = arith.addf %55, %5 : vector<6x128xf32>
    %cst_31 = arith.constant dense<0.000000e+00> : vector<32x128xf32>
    %57 = tpu.matmul %0, %56, %cst_31 {dimension_numbers = #tpu.dot_dimension_numbers<[1], [0], [0], [1], [0, 0, 1, 1], [], []>} : vector<32x6xf32>, vector<6x128xf32>, vector<32x128xf32> -> vector<32x128xf32>
    %c5 = arith.constant 5 : index
    %c0_32 = arith.constant 0 : index
    %c0_33 = arith.constant 0 : index
    %58 = vector.load %arg4[%c5, %c0_32, %c0_33] : memref<9x32x1xf32, #tpu.memory_space<vmem>>, vector<1x32x1xf32>
    %59 = vector.shape_cast %58 : vector<1x32x1xf32> to vector<32x1xf32>
    %60 = vector.broadcast %59 : vector<32x1xf32> to vector<32x128xf32>
    %61 = arith.addf %57, %60 : vector<32x128xf32>
    %62 = math.tanh %61 : vector<32x128xf32>
    %cst_34 = arith.constant dense<0.000000e+00> : vector<6x128xf32>
    %63 = tpu.matmul %1, %62, %cst_34 {dimension_numbers = #tpu.dot_dimension_numbers<[1], [0], [0], [1], [0, 0, 1, 1], [], []>} : vector<6x32xf32>, vector<32x128xf32>, vector<6x128xf32> -> vector<6x128xf32>
    %64 = arith.mulf %63, %3 : vector<6x128xf32>
    %65 = arith.addf %56, %64 : vector<6x128xf32>
    %66 = arith.addf %65, %5 : vector<6x128xf32>
    %cst_35 = arith.constant dense<0.000000e+00> : vector<32x128xf32>
    %67 = tpu.matmul %0, %66, %cst_35 {dimension_numbers = #tpu.dot_dimension_numbers<[1], [0], [0], [1], [0, 0, 1, 1], [], []>} : vector<32x6xf32>, vector<6x128xf32>, vector<32x128xf32> -> vector<32x128xf32>
    %c6 = arith.constant 6 : index
    %c0_36 = arith.constant 0 : index
    %c0_37 = arith.constant 0 : index
    %68 = vector.load %arg4[%c6, %c0_36, %c0_37] : memref<9x32x1xf32, #tpu.memory_space<vmem>>, vector<1x32x1xf32>
    %69 = vector.shape_cast %68 : vector<1x32x1xf32> to vector<32x1xf32>
    %70 = vector.broadcast %69 : vector<32x1xf32> to vector<32x128xf32>
    %71 = arith.addf %67, %70 : vector<32x128xf32>
    %72 = math.tanh %71 : vector<32x128xf32>
    %cst_38 = arith.constant dense<0.000000e+00> : vector<6x128xf32>
    %73 = tpu.matmul %1, %72, %cst_38 {dimension_numbers = #tpu.dot_dimension_numbers<[1], [0], [0], [1], [0, 0, 1, 1], [], []>} : vector<6x32xf32>, vector<32x128xf32>, vector<6x128xf32> -> vector<6x128xf32>
    %74 = arith.mulf %73, %3 : vector<6x128xf32>
    %75 = arith.addf %66, %74 : vector<6x128xf32>
    %76 = arith.addf %75, %5 : vector<6x128xf32>
    %cst_39 = arith.constant dense<0.000000e+00> : vector<32x128xf32>
    %77 = tpu.matmul %0, %76, %cst_39 {dimension_numbers = #tpu.dot_dimension_numbers<[1], [0], [0], [1], [0, 0, 1, 1], [], []>} : vector<32x6xf32>, vector<6x128xf32>, vector<32x128xf32> -> vector<32x128xf32>
    %c7 = arith.constant 7 : index
    %c0_40 = arith.constant 0 : index
    %c0_41 = arith.constant 0 : index
    %78 = vector.load %arg4[%c7, %c0_40, %c0_41] : memref<9x32x1xf32, #tpu.memory_space<vmem>>, vector<1x32x1xf32>
    %79 = vector.shape_cast %78 : vector<1x32x1xf32> to vector<32x1xf32>
    %80 = vector.broadcast %79 : vector<32x1xf32> to vector<32x128xf32>
    %81 = arith.addf %77, %80 : vector<32x128xf32>
    %82 = math.tanh %81 : vector<32x128xf32>
    %cst_42 = arith.constant dense<0.000000e+00> : vector<6x128xf32>
    %83 = tpu.matmul %1, %82, %cst_42 {dimension_numbers = #tpu.dot_dimension_numbers<[1], [0], [0], [1], [0, 0, 1, 1], [], []>} : vector<6x32xf32>, vector<32x128xf32>, vector<6x128xf32> -> vector<6x128xf32>
    %84 = arith.mulf %83, %3 : vector<6x128xf32>
    %85 = arith.addf %76, %84 : vector<6x128xf32>
    %86 = arith.addf %85, %5 : vector<6x128xf32>
    %cst_43 = arith.constant dense<0.000000e+00> : vector<32x128xf32>
    %87 = tpu.matmul %0, %86, %cst_43 {dimension_numbers = #tpu.dot_dimension_numbers<[1], [0], [0], [1], [0, 0, 1, 1], [], []>} : vector<32x6xf32>, vector<6x128xf32>, vector<32x128xf32> -> vector<32x128xf32>
    %c8 = arith.constant 8 : index
    %c0_44 = arith.constant 0 : index
    %c0_45 = arith.constant 0 : index
    %88 = vector.load %arg4[%c8, %c0_44, %c0_45] : memref<9x32x1xf32, #tpu.memory_space<vmem>>, vector<1x32x1xf32>
    %89 = vector.shape_cast %88 : vector<1x32x1xf32> to vector<32x1xf32>
    %90 = vector.broadcast %89 : vector<32x1xf32> to vector<32x128xf32>
    %91 = arith.addf %87, %90 : vector<32x128xf32>
    %92 = math.tanh %91 : vector<32x128xf32>
    %cst_46 = arith.constant dense<0.000000e+00> : vector<6x128xf32>
    %93 = tpu.matmul %1, %92, %cst_46 {dimension_numbers = #tpu.dot_dimension_numbers<[1], [0], [0], [1], [0, 0, 1, 1], [], []>} : vector<6x32xf32>, vector<32x128xf32>, vector<6x128xf32> -> vector<6x128xf32>
    %94 = arith.mulf %93, %3 : vector<6x128xf32>
    %95 = arith.addf %86, %94 : vector<6x128xf32>
    %96 = arith.addf %95, %5 : vector<6x128xf32>
    %c0_47 = arith.constant 0 : index
    %c0_48 = arith.constant 0 : index
    %97 = vector.load %arg6[%c0_47, %c0_48] : memref<6x128xf32, #tpu.memory_space<vmem>>, vector<6x128xf32>
    tpu.vector_store %arg6[%c0_47, %c0_48], %96 {strides = array<i32>} : memref<6x128xf32, #tpu.memory_space<vmem>>, vector<6x128xf32>,
    return
  }
  func.func @transform_0(%arg0: i32) -> (i32, i32) {
    %c0_i32 = arith.constant 0 : i32
    %c0_i32_0 = arith.constant 0 : i32
    %c0_i32_1 = arith.constant 0 : i32
    return %c0_i32, %c0_i32_0 : i32, i32
  }
  func.func @transform_1(%arg0: i32) -> (i32, i32) {
    %c0_i32 = arith.constant 0 : i32
    %c0_i32_0 = arith.constant 0 : i32
    %c0_i32_1 = arith.constant 0 : i32
    return %c0_i32, %c0_i32_0 : i32, i32
  }
  func.func @transform_2(%arg0: i32) -> (i32, i32) {
    %c0_i32 = arith.constant 0 : i32
    %c0_i32_0 = arith.constant 0 : i32
    %c0_i32_1 = arith.constant 0 : i32
    return %c0_i32, %c0_i32_0 : i32, i32
  }
  func.func @transform_3(%arg0: i32) -> (i32, i32, i32) {
    %c0_i32 = arith.constant 0 : i32
    %c0_i32_0 = arith.constant 0 : i32
    %c0_i32_1 = arith.constant 0 : i32
    %c0_i32_2 = arith.constant 0 : i32
    return %c0_i32, %c0_i32_0, %c0_i32_1 : i32, i32, i32
  }
  func.func @transform_4(%arg0: i32) -> (i32, i32, i32) {
    %c0_i32 = arith.constant 0 : i32
    %c0_i32_0 = arith.constant 0 : i32
    %c0_i32_1 = arith.constant 0 : i32
    %c0_i32_2 = arith.constant 0 : i32
    return %c0_i32, %c0_i32_0, %c0_i32_1 : i32, i32, i32
  }
  func.func @transform_5(%arg0: i32) -> (i32, i32) {
    %c0_i32 = arith.constant 0 : i32
    %c0_i32_0 = arith.constant 0 : i32
    %c0_i32_1 = arith.constant 0 : i32
    return %c0_i32, %c0_i32_0 : i32, i32
  }
}

</mosaic_0001>

<llo_original>
// kernel: conditioned_ode_solve.1
$region0: #{conditioned_ode_solve.1}
  #allocation0 [shape = 'u32[]', space=smem, size = 0x4, offset = 0x4, fixed_abs, tag = 'smem constant byte address 0x4 - core index']
  #allocation1 [shape = 'u32[72,128]{1,0:T(1,128)}', space=vmem, size = 0x9000, scoped, tag = 'internal scratch']
  %s0 = inlined_call_operand.vmem [shape: f32[6,128], index: 0, kind: input, shape index: {}, may-alias: {0,5}]
  %s1 = inlined_call_operand.vmem [shape: f32[32,6], index: 1, kind: input, shape index: {}]
  %s2 = inlined_call_operand.vmem [shape: f32[6,32], index: 2, kind: input, shape index: {}]
  %s3 = inlined_call_operand.vmem [shape: f32[9,32,1], index: 3, kind: input, shape index: {}]
  %s4 = inlined_call_operand.vmem [shape: f32[2,6,128], index: 4, kind: input, shape index: {}]
  %s5 = inlined_call_operand.vmem [shape: f32[6,128], index: 5, kind: output, shape index: {}, may-alias: {0,5}]
  %s6 = sld [smem:[#allocation0]]
  $region30: #{conditioned_ode_solve.1} parent=0
    _
  %s8 = ssub.s32 1, %s6
  %s9 = scalar_select 0, %s8, %s6
  // Predicated region
  $region2: #{conditioned_ode_solve.1} parent=0 // pred_check
    _
  $region3: #{conditioned_ode_solve.1} parent=0 // pred_check_branch
    %11 = sbr.rel (0) target = $region5
  $region4: #{conditioned_ode_solve.1} parent=0 // pred_region
    _
  $region5: #{conditioned_ode_solve.1} parent=0 // pred_fallthru
    _
  // Predicated region
  $region6: #{conditioned_ode_solve.1} parent=0 // pred_check
    _
  $region7: #{conditioned_ode_solve.1} parent=0 // pred_check_branch
    %13 = sbr.rel (0) target = $region9
  $region8: #{conditioned_ode_solve.1} parent=0 // pred_region
    _
  $region9: #{conditioned_ode_solve.1} parent=0 // pred_fallthru
    _
  // Predicated region
  $region10: #{conditioned_ode_solve.1} parent=0 // pred_check
    _
  $region11: #{conditioned_ode_solve.1} parent=0 // pred_check_branch
    %15 = sbr.rel (0) target = $region13
  $region12: #{conditioned_ode_solve.1} parent=0 // pred_region
    _
  $region13: #{conditioned_ode_solve.1} parent=0 // pred_fallthru
    _
  // Predicated region
  $region14: #{conditioned_ode_solve.1} parent=0 // pred_check
    _
  $region15: #{conditioned_ode_solve.1} parent=0 // pred_check_branch
    %17 = sbr.rel (0) target = $region17
  $region16: #{conditioned_ode_solve.1} parent=0 // pred_region
    _
  $region17: #{conditioned_ode_solve.1} parent=0 // pred_fallthru
    _
  // Predicated region
  $region18: #{conditioned_ode_solve.1} parent=0 // pred_check
    _
  $region19: #{conditioned_ode_solve.1} parent=0 // pred_check_branch
    %19 = sbr.rel (0) target = $region21
  $region20: #{conditioned_ode_solve.1} parent=0 // pred_region
    _
  $region21: #{conditioned_ode_solve.1} parent=0 // pred_fallthru
    _
  %v20 = vld [vmem:[%s1] sm:$0xff]
  %v21 = vld [vmem:[%s1 + $0x8] sm:$0xff]
  %v22 = vld [vmem:[%s1 + $0x10] sm:$0xff]
  %v23 = vld [vmem:[%s1 + $0x18] sm:$0xff]
  %v24 = vld [vmem:[%s2] sm:$0x3f]
  %v25 = vld [vmem:[%s4] sm:$0x3f]
  %s26 = scalar_lea.vmem %s4, 8
  %v27 = vld [vmem:[%s26] sm:$0x3f]
  %v28 = vld [vmem:[%s0] sm:$0x3f]
  %v29 = vld [vmem:[%s3] sm:$0xff]
  %v30 = vld [vmem:[%s3 + $0x8] sm:$0xff]
  %v31 = vld [vmem:[%s3 + $0x10] sm:$0xff]
  %v32 = vld [vmem:[%s3 + $0x18] sm:$0xff]
  %34 = vset.pattern.permute.xlu0 0
  %35 = vperm.xlu0 %34, %v29
  %v36 = vpop.permute.xlu0 %35
  %39 = vset.pattern.permute.xlu0 0
  %40 = vperm.xlu0 %39, %v30
  %v41 = vpop.permute.xlu0 %40
  %44 = vset.pattern.permute.xlu0 0
  %45 = vperm.xlu0 %44, %v31
  %v46 = vpop.permute.xlu0 %45
  %49 = vset.pattern.permute.xlu0 0
  %50 = vperm.xlu0 %49, %v32
  %v51 = vpop.permute.xlu0 %50
  %vm53 = vcmask 48128
  %v55 = vsel %vm53, %v20, 0
  %v58 = vsel %vm53, %v21, 0
  %v61 = vsel %vm53, %v22, 0
  %v64 = vsel %vm53, %v23, 0
  %vm66 = vcmask 1045504
  %v68 = vsel %vm66, %v28, 0
  %70 = vmatpush.msra.mxu0 0.0
  %71 = vmatpush.msra.mxu0 0.0
  %72 = vmatpush.msra.mxu0 0.0
  %73 = vmatpush.msra.mxu0 0.0
  %74 = vmatpush.msra.mxu0 0.0
  %75 = vmatpush.msra.mxu0 0.0
  %76 = vmatpush.msra.mxu0 0.0
  %77 = vmatpush.msra.mxu0 0.0
  %78 = vmatpush.msra.mxu0 0.0
  %79 = vmatpush.msra.mxu0 0.0
  %80 = vmatpush.msra.mxu0 0.0
  %81 = vmatpush.msra.mxu0 0.0
  %82 = vmatpush.msra.mxu0 0.0
  %83 = vmatpush.msra.mxu0 0.0
  %84 = vmatpush.msra.mxu0 0.0
  %85 = vmatpush.msra.mxu0 %v68
  %86 = vmatmul.f32.gmra.mxu0 %v55
  %v87 = vpop.f32.mrf.mxu0
  %v88 = vadd.f32 %v36, %v87
  %89 = vmatmul.f32.gmra.mxu0 %v58
  %v90 = vpop.f32.mrf.mxu0
  %v91 = vadd.f32 %v41, %v90
  %92 = vmatmul.f32.gmra.mxu0 %v61
  %v93 = vpop.f32.mrf.mxu0
  %v94 = vadd.f32 %v46, %v93
  %95 = vmatmul.f32.gmra.mxu0 %v64
  %v96 = vpop.f32.mrf.mxu0
  %v97 = vadd.f32 %v51, %v96
  %98 = vdwg.mxu0
  %v99 = vtanh.pop %v88
  %v100 = vtanh.pop %v91
  %v101 = vtanh.pop %v94
  %v102 = vtanh.pop %v97
  %vm103 = vcmask 261120
  %v105 = vsel %vm103, %v24, 0
  %107 = vmatpush.msra.mxu0 0.0
  %108 = vmatpush.msra.mxu0 0.0
  %109 = vmatpush.msra.mxu0 0.0
  %110 = vmatpush.msra.mxu0 0.0
  %111 = vmatpush.msra.mxu0 0.0
  %112 = vmatpush.msra.mxu0 0.0
  %113 = vmatpush.msra.mxu0 0.0
  %114 = vmatpush.msra.mxu0 0.0
  %115 = vmatpush.msra.mxu0 0.0
  %116 = vmatpush.msra.mxu0 0.0
  %117 = vmatpush.msra.mxu0 0.0
  %118 = vmatpush.msra.mxu0 0.0
  %119 = vmatpush.msra.mxu0 %v102
  %120 = vmatpush.msra.mxu0 %v101
  %121 = vmatpush.msra.mxu0 %v100
  %122 = vmatpush.msra.mxu0 %v99
  %123 = vmatmul.f32.gmra.mxu0 %v105
  %v124 = vpop.f32.mrf.mxu0
  %v125 = vadd.f32 0.0, %v124
  %126 = vdwg.mxu0
  %v127 = vmul.f32 %v125, %v25
  %v128 = vadd.f32 %v28, %v127
  %v129 = vadd.f32 %v128, %v27
  %s130 = scalar_lea.vmem %s3, 32
  %v131 = vld [vmem:[%s130] sm:$0xff]
  %v132 = vld [vmem:[%s130 + $0x8] sm:$0xff]
  %v133 = vld [vmem:[%s130 + $0x10] sm:$0xff]
  %v134 = vld [vmem:[%s130 + $0x18] sm:$0xff]
  %136 = vset.pattern.permute.xlu0 0
  %137 = vperm.xlu0 %136, %v131
  %v138 = vpop.permute.xlu0 %137
  %141 = vset.pattern.permute.xlu0 0
  %142 = vperm.xlu0 %141, %v132
  %v143 = vpop.permute.xlu0 %142
  %146 = vset.pattern.permute.xlu0 0
  %147 = vperm.xlu0 %146, %v133
  %v148 = vpop.permute.xlu0 %147
  %151 = vset.pattern.permute.xlu0 0
  %152 = vperm.xlu0 %151, %v134
  %v153 = vpop.permute.xlu0 %152
  %v156 = vsel %vm66, %v129, 0
  %158 = vmatpush.msra.mxu0 0.0
  %159 = vmatpush.msra.mxu0 0.0
  %160 = vmatpush.msra.mxu0 0.0
  %161 = vmatpush.msra.mxu0 0.0
  %162 = vmatpush.msra.mxu0 0.0
  %163 = vmatpush.msra.mxu0 0.0
  %164 = vmatpush.msra.mxu0 0.0
  %165 = vmatpush.msra.mxu0 0.0
  %166 = vmatpush.msra.mxu0 0.0
  %167 = vmatpush.msra.mxu0 0.0
  %168 = vmatpush.msra.mxu0 0.0
  %169 = vmatpush.msra.mxu0 0.0
  %170 = vmatpush.msra.mxu0 0.0
  %171 = vmatpush.msra.mxu0 0.0
  %172 = vmatpush.msra.mxu0 0.0
  %173 = vmatpush.msra.mxu0 %v156
  %174 = vmatmul.f32.gmra.mxu0 %v55
  %v175 = vpop.f32.mrf.mxu0
  %v176 = vadd.f32 %v138, %v175
  %177 = vmatmul.f32.gmra.mxu0 %v58
  %v178 = vpop.f32.mrf.mxu0
  %v179 = vadd.f32 %v143, %v178
  %180 = vmatmul.f32.gmra.mxu0 %v61
  %v181 = vpop.f32.mrf.mxu0
  %v182 = vadd.f32 %v148, %v181
  %183 = vmatmul.f32.gmra.mxu0 %v64
  %v184 = vpop.f32.mrf.mxu0
  %v185 = vadd.f32 %v153, %v184
  %186 = vdwg.mxu0
  %v187 = vtanh.pop %v176
  %v188 = vtanh.pop %v179
  %v189 = vtanh.pop %v182
  %v190 = vtanh.pop %v185
  %191 = vmatpush.msra.mxu0 0.0
  %192 = vmatpush.msra.mxu0 0.0
  %193 = vmatpush.msra.mxu0 0.0
  %194 = vmatpush.msra.mxu0 0.0
  %195 = vmatpush.msra.mxu0 0.0
  %196 = vmatpush.msra.mxu0 0.0
  %197 = vmatpush.msra.mxu0 0.0
  %198 = vmatpush.msra.mxu0 0.0
  %199 = vmatpush.msra.mxu0 0.0
  %200 = vmatpush.msra.mxu0 0.0
  %201 = vmatpush.msra.mxu0 0.0
  %202 = vmatpush.msra.mxu0 0.0
  %203 = vmatpush.msra.mxu0 %v190
  %204 = vmatpush.msra.mxu0 %v189
  %205 = vmatpush.msra.mxu0 %v188
  %206 = vmatpush.msra.mxu0 %v187
  %207 = vmatmul.f32.gmra.mxu0 %v105
  %v208 = vpop.f32.mrf.mxu0
  %v209 = vadd.f32 0.0, %v208
  %210 = vdwg.mxu0
  %v211 = vmul.f32 %v209, %v25
  %v212 = vadd.f32 %v129, %v211
  %v213 = vadd.f32 %v212, %v27
  %s214 = scalar_lea.vmem %s3, 64
  %v215 = vld [vmem:[%s214] sm:$0xff]
  %v216 = vld [vmem:[%s214 + $0x8] sm:$0xff]
  %v217 = vld [vmem:[%s214 + $0x10] sm:$0xff]
  %v218 = vld [vmem:[%s214 + $0x18] sm:$0xff]
  %220 = vset.pattern.permute.xlu0 0
  %221 = vperm.xlu0 %220, %v215
  %v222 = vpop.permute.xlu0 %221
  %225 = vset.pattern.permute.xlu0 0
  %226 = vperm.xlu0 %225, %v216
  %v227 = vpop.permute.xlu0 %226
  %230 = vset.pattern.permute.xlu0 0
  %231 = vperm.xlu0 %230, %v217
  %v232 = vpop.permute.xlu0 %231
  %235 = vset.pattern.permute.xlu0 0
  %236 = vperm.xlu0 %235, %v218
  %v237 = vpop.permute.xlu0 %236
  %v240 = vsel %vm66, %v213, 0
  %242 = vmatpush.msra.mxu0 0.0
  %243 = vmatpush.msra.mxu0 0.0
  %244 = vmatpush.msra.mxu0 0.0
  %245 = vmatpush.msra.mxu0 0.0
  %246 = vmatpush.msra.mxu0 0.0
  %247 = vmatpush.msra.mxu0 0.0
  %248 = vmatpush.msra.mxu0 0.0
  %249 = vmatpush.msra.mxu0 0.0
  %250 = vmatpush.msra.mxu0 0.0
  %251 = vmatpush.msra.mxu0 0.0
  %252 = vmatpush.msra.mxu0 0.0
  %253 = vmatpush.msra.mxu0 0.0
  %254 = vmatpush.msra.mxu0 0.0
  %255 = vmatpush.msra.mxu0 0.0
  %256 = vmatpush.msra.mxu0 0.0
  %257 = vmatpush.msra.mxu0 %v240
  %258 = vmatmul.f32.gmra.mxu0 %v55
  %v259 = vpop.f32.mrf.mxu0
  %v260 = vadd.f32 %v222, %v259
  %261 = vmatmul.f32.gmra.mxu0 %v58
  %v262 = vpop.f32.mrf.mxu0
  %v263 = vadd.f32 %v227, %v262
  %264 = vmatmul.f32.gmra.mxu0 %v61
  %v265 = vpop.f32.mrf.mxu0
  %v266 = vadd.f32 %v232, %v265
  %267 = vmatmul.f32.gmra.mxu0 %v64
  %v268 = vpop.f32.mrf.mxu0
  %v269 = vadd.f32 %v237, %v268
  %270 = vdwg.mxu0
  %v271 = vtanh.pop %v260
  %v272 = vtanh.pop %v263
  %v273 = vtanh.pop %v266
  %v274 = vtanh.pop %v269
  %275 = vmatpush.msra.mxu0 0.0
  %276 = vmatpush.msra.mxu0 0.0
  %277 = vmatpush.msra.mxu0 0.0
  %278 = vmatpush.msra.mxu0 0.0
  %279 = vmatpush.msra.mxu0 0.0
  %280 = vmatpush.msra.mxu0 0.0
  %281 = vmatpush.msra.mxu0 0.0
  %282 = vmatpush.msra.mxu0 0.0
  %283 = vmatpush.msra.mxu0 0.0
  %284 = vmatpush.msra.mxu0 0.0
  %285 = vmatpush.msra.mxu0 0.0
  %286 = vmatpush.msra.mxu0 0.0
  %287 = vmatpush.msra.mxu0 %v274
  %288 = vmatpush.msra.mxu0 %v273
  %289 = vmatpush.msra.mxu0 %v272
  %290 = vmatpush.msra.mxu0 %v271
  %291 = vmatmul.f32.gmra.mxu0 %v105
  %v292 = vpop.f32.mrf.mxu0
  %v293 = vadd.f32 0.0, %v292
  %294 = vdwg.mxu0
  %v295 = vmul.f32 %v293, %v25
  %v296 = vadd.f32 %v213, %v295
  %v297 = vadd.f32 %v296, %v27
  %s298 = scalar_lea.vmem %s3, 96
  %v299 = vld [vmem:[%s298] sm:$0xff]
  %v300 = vld [vmem:[%s298 + $0x8] sm:$0xff]
  %v301 = vld [vmem:[%s298 + $0x10] sm:$0xff]
  %v302 = vld [vmem:[%s298 + $0x18] sm:$0xff]
  %304 = vset.pattern.permute.xlu0 0
  %305 = vperm.xlu0 %304, %v299
  %v306 = vpop.permute.xlu0 %305
  %309 = vset.pattern.permute.xlu0 0
  %310 = vperm.xlu0 %309, %v300
  %v311 = vpop.permute.xlu0 %310
  %314 = vset.pattern.permute.xlu0 0
  %315 = vperm.xlu0 %314, %v301
  %v316 = vpop.permute.xlu0 %315
  %319 = vset.pattern.permute.xlu0 0
  %320 = vperm.xlu0 %319, %v302
  %v321 = vpop.permute.xlu0 %320
  %v324 = vsel %vm66, %v297, 0
  %326 = vmatpush.msra.mxu0 0.0
  %327 = vmatpush.msra.mxu0 0.0
  %328 = vmatpush.msra.mxu0 0.0
  %329 = vmatpush.msra.mxu0 0.0
  %330 = vmatpush.msra.mxu0 0.0
  %331 = vmatpush.msra.mxu0 0.0
  %332 = vmatpush.msra.mxu0 0.0
  %333 = vmatpush.msra.mxu0 0.0
  %334 = vmatpush.msra.mxu0 0.0
  %335 = vmatpush.msra.mxu0 0.0
  %336 = vmatpush.msra.mxu0 0.0
  %337 = vmatpush.msra.mxu0 0.0
  %338 = vmatpush.msra.mxu0 0.0
  %339 = vmatpush.msra.mxu0 0.0
  %340 = vmatpush.msra.mxu0 0.0
  %341 = vmatpush.msra.mxu0 %v324
  %342 = vmatmul.f32.gmra.mxu0 %v55
  %v343 = vpop.f32.mrf.mxu0
  %v344 = vadd.f32 %v306, %v343
  %345 = vmatmul.f32.gmra.mxu0 %v58
  %v346 = vpop.f32.mrf.mxu0
  %v347 = vadd.f32 %v311, %v346
  %348 = vmatmul.f32.gmra.mxu0 %v61
  %v349 = vpop.f32.mrf.mxu0
  %v350 = vadd.f32 %v316, %v349
  %351 = vmatmul.f32.gmra.mxu0 %v64
  %v352 = vpop.f32.mrf.mxu0
  %v353 = vadd.f32 %v321, %v352
  %354 = vdwg.mxu0
  %v355 = vtanh.pop %v344
  %v356 = vtanh.pop %v347
  %v357 = vtanh.pop %v350
  %v358 = vtanh.pop %v353
  %359 = vmatpush.msra.mxu0 0.0
  %360 = vmatpush.msra.mxu0 0.0
  %361 = vmatpush.msra.mxu0 0.0
  %362 = vmatpush.msra.mxu0 0.0
  %363 = vmatpush.msra.mxu0 0.0
  %364 = vmatpush.msra.mxu0 0.0
  %365 = vmatpush.msra.mxu0 0.0
  %366 = vmatpush.msra.mxu0 0.0
  %367 = vmatpush.msra.mxu0 0.0
  %368 = vmatpush.msra.mxu0 0.0
  %369 = vmatpush.msra.mxu0 0.0
  %370 = vmatpush.msra.mxu0 0.0
  %371 = vmatpush.msra.mxu0 %v358
  %372 = vmatpush.msra.mxu0 %v357
  %373 = vmatpush.msra.mxu0 %v356
  %374 = vmatpush.msra.mxu0 %v355
  %375 = vmatmul.f32.gmra.mxu0 %v105
  %v376 = vpop.f32.mrf.mxu0
  %v377 = vadd.f32 0.0, %v376
  %378 = vdwg.mxu0
  %v379 = vmul.f32 %v377, %v25
  %v380 = vadd.f32 %v297, %v379
  %v381 = vadd.f32 %v380, %v27
  %s382 = scalar_lea.vmem %s3, 128
  %v383 = vld [vmem:[%s382] sm:$0xff]
  %v384 = vld [vmem:[%s382 + $0x8] sm:$0xff]
  %v385 = vld [vmem:[%s382 + $0x10] sm:$0xff]
  %v386 = vld [vmem:[%s382 + $0x18] sm:$0xff]
  %388 = vset.pattern.permute.xlu0 0
  %389 = vperm.xlu0 %388, %v383
  %v390 = vpop.permute.xlu0 %389
  %393 = vset.pattern.permute.xlu0 0
  %394 = vperm.xlu0 %393, %v384
  %v395 = vpop.permute.xlu0 %394
  %398 = vset.pattern.permute.xlu0 0
  %399 = vperm.xlu0 %398, %v385
  %v400 = vpop.permute.xlu0 %399
  %403 = vset.pattern.permute.xlu0 0
  %404 = vperm.xlu0 %403, %v386
  %v405 = vpop.permute.xlu0 %404
  %v408 = vsel %vm66, %v381, 0
  %410 = vmatpush.msra.mxu0 0.0
  %411 = vmatpush.msra.mxu0 0.0
  %412 = vmatpush.msra.mxu0 0.0
  %413 = vmatpush.msra.mxu0 0.0
  %414 = vmatpush.msra.mxu0 0.0
  %415 = vmatpush.msra.mxu0 0.0
  %416 = vmatpush.msra.mxu0 0.0
  %417 = vmatpush.msra.mxu0 0.0
  %418 = vmatpush.msra.mxu0 0.0
  %419 = vmatpush.msra.mxu0 0.0
  %420 = vmatpush.msra.mxu0 0.0
  %421 = vmatpush.msra.mxu0 0.0
  %422 = vmatpush.msra.mxu0 0.0
  %423 = vmatpush.msra.mxu0 0.0
  %424 = vmatpush.msra.mxu0 0.0
  %425 = vmatpush.msra.mxu0 %v408
  %426 = vmatmul.f32.gmra.mxu0 %v55
  %v427 = vpop.f32.mrf.mxu0
  %v428 = vadd.f32 %v390, %v427
  %429 = vmatmul.f32.gmra.mxu0 %v58
  %v430 = vpop.f32.mrf.mxu0
  %v431 = vadd.f32 %v395, %v430
  %432 = vmatmul.f32.gmra.mxu0 %v61
  %v433 = vpop.f32.mrf.mxu0
  %v434 = vadd.f32 %v400, %v433
  %435 = vmatmul.f32.gmra.mxu0 %v64
  %v436 = vpop.f32.mrf.mxu0
  %v437 = vadd.f32 %v405, %v436
  %438 = vdwg.mxu0
  %v439 = vtanh.pop %v428
  %v440 = vtanh.pop %v431
  %v441 = vtanh.pop %v434
  %v442 = vtanh.pop %v437
  %443 = vmatpush.msra.mxu0 0.0
  %444 = vmatpush.msra.mxu0 0.0
  %445 = vmatpush.msra.mxu0 0.0
  %446 = vmatpush.msra.mxu0 0.0
  %447 = vmatpush.msra.mxu0 0.0
  %448 = vmatpush.msra.mxu0 0.0
  %449 = vmatpush.msra.mxu0 0.0
  %450 = vmatpush.msra.mxu0 0.0
  %451 = vmatpush.msra.mxu0 0.0
  %452 = vmatpush.msra.mxu0 0.0
  %453 = vmatpush.msra.mxu0 0.0
  %454 = vmatpush.msra.mxu0 0.0
  %455 = vmatpush.msra.mxu0 %v442
  %456 = vmatpush.msra.mxu0 %v441
  %457 = vmatpush.msra.mxu0 %v440
  %458 = vmatpush.msra.mxu0 %v439
  %459 = vmatmul.f32.gmra.mxu0 %v105
  %v460 = vpop.f32.mrf.mxu0
  %v461 = vadd.f32 0.0, %v460
  %462 = vdwg.mxu0
  %v463 = vmul.f32 %v461, %v25
  %v464 = vadd.f32 %v381, %v463
  %v465 = vadd.f32 %v464, %v27
  %s466 = scalar_lea.vmem %s3, 160
  %v467 = vld [vmem:[%s466] sm:$0xff]
  %v468 = vld [vmem:[%s466 + $0x8] sm:$0xff]
  %v469 = vld [vmem:[%s466 + $0x10] sm:$0xff]
  %v470 = vld [vmem:[%s466 + $0x18] sm:$0xff]
  %472 = vset.pattern.permute.xlu0 0
  %473 = vperm.xlu0 %472, %v467
  %v474 = vpop.permute.xlu0 %473
  %477 = vset.pattern.permute.xlu0 0
  %478 = vperm.xlu0 %477, %v468
  %v479 = vpop.permute.xlu0 %478
  %482 = vset.pattern.permute.xlu0 0
  %483 = vperm.xlu0 %482, %v469
  %v484 = vpop.permute.xlu0 %483
  %487 = vset.pattern.permute.xlu0 0
  %488 = vperm.xlu0 %487, %v470
  %v489 = vpop.permute.xlu0 %488
  %v492 = vsel %vm66, %v465, 0
  %494 = vmatpush.msra.mxu0 0.0
  %495 = vmatpush.msra.mxu0 0.0
  %496 = vmatpush.msra.mxu0 0.0
  %497 = vmatpush.msra.mxu0 0.0
  %498 = vmatpush.msra.mxu0 0.0
  %499 = vmatpush.msra.mxu0 0.0
  %500 = vmatpush.msra.mxu0 0.0
  %501 = vmatpush.msra.mxu0 0.0
  %502 = vmatpush.msra.mxu0 0.0
  %503 = vmatpush.msra.mxu0 0.0
  %504 = vmatpush.msra.mxu0 0.0
  %505 = vmatpush.msra.mxu0 0.0
  %506 = vmatpush.msra.mxu0 0.0
  %507 = vmatpush.msra.mxu0 0.0
  %508 = vmatpush.msra.mxu0 0.0
  %509 = vmatpush.msra.mxu0 %v492
  %510 = vmatmul.f32.gmra.mxu0 %v55
  %v511 = vpop.f32.mrf.mxu0
  %v512 = vadd.f32 %v474, %v511
  %513 = vmatmul.f32.gmra.mxu0 %v58
  %v514 = vpop.f32.mrf.mxu0
  %v515 = vadd.f32 %v479, %v514
  %516 = vmatmul.f32.gmra.mxu0 %v61
  %v517 = vpop.f32.mrf.mxu0
  %v518 = vadd.f32 %v484, %v517
  %519 = vmatmul.f32.gmra.mxu0 %v64
  %v520 = vpop.f32.mrf.mxu0
  %v521 = vadd.f32 %v489, %v520
  %522 = vdwg.mxu0
  %v523 = vtanh.pop %v512
  %v524 = vtanh.pop %v515
  %v525 = vtanh.pop %v518
  %v526 = vtanh.pop %v521
  %527 = vmatpush.msra.mxu0 0.0
  %528 = vmatpush.msra.mxu0 0.0
  %529 = vmatpush.msra.mxu0 0.0
  %530 = vmatpush.msra.mxu0 0.0
  %531 = vmatpush.msra.mxu0 0.0
  %532 = vmatpush.msra.mxu0 0.0
  %533 = vmatpush.msra.mxu0 0.0
  %534 = vmatpush.msra.mxu0 0.0
  %535 = vmatpush.msra.mxu0 0.0
  %536 = vmatpush.msra.mxu0 0.0
  %537 = vmatpush.msra.mxu0 0.0
  %538 = vmatpush.msra.mxu0 0.0
  %539 = vmatpush.msra.mxu0 %v526
  %540 = vmatpush.msra.mxu0 %v525
  %541 = vmatpush.msra.mxu0 %v524
  %542 = vmatpush.msra.mxu0 %v523
  %543 = vmatmul.f32.gmra.mxu0 %v105
  %v544 = vpop.f32.mrf.mxu0
  %v545 = vadd.f32 0.0, %v544
  %546 = vdwg.mxu0
  %v547 = vmul.f32 %v545, %v25
  %v548 = vadd.f32 %v465, %v547
  %v549 = vadd.f32 %v548, %v27
  %s550 = scalar_lea.vmem %s3, 192
  %v551 = vld [vmem:[%s550] sm:$0xff]
  %v552 = vld [vmem:[%s550 + $0x8] sm:$0xff]
  %v553 = vld [vmem:[%s550 + $0x10] sm:$0xff]
  %v554 = vld [vmem:[%s550 + $0x18] sm:$0xff]
  %556 = vset.pattern.permute.xlu0 0
  %557 = vperm.xlu0 %556, %v551
  %v558 = vpop.permute.xlu0 %557
  %561 = vset.pattern.permute.xlu0 0
  %562 = vperm.xlu0 %561, %v552
  %v563 = vpop.permute.xlu0 %562
  %566 = vset.pattern.permute.xlu0 0
  %567 = vperm.xlu0 %566, %v553
  %v568 = vpop.permute.xlu0 %567
  %571 = vset.pattern.permute.xlu0 0
  %572 = vperm.xlu0 %571, %v554
  %v573 = vpop.permute.xlu0 %572
  %v576 = vsel %vm66, %v549, 0
  %578 = vmatpush.msra.mxu0 0.0
  %579 = vmatpush.msra.mxu0 0.0
  %580 = vmatpush.msra.mxu0 0.0
  %581 = vmatpush.msra.mxu0 0.0
  %582 = vmatpush.msra.mxu0 0.0
  %583 = vmatpush.msra.mxu0 0.0
  %584 = vmatpush.msra.mxu0 0.0
  %585 = vmatpush.msra.mxu0 0.0
  %586 = vmatpush.msra.mxu0 0.0
  %587 = vmatpush.msra.mxu0 0.0
  %588 = vmatpush.msra.mxu0 0.0
  %589 = vmatpush.msra.mxu0 0.0
  %590 = vmatpush.msra.mxu0 0.0
  %591 = vmatpush.msra.mxu0 0.0
  %592 = vmatpush.msra.mxu0 0.0
  %593 = vmatpush.msra.mxu0 %v576
  %594 = vmatmul.f32.gmra.mxu0 %v55
  %v595 = vpop.f32.mrf.mxu0
  %v596 = vadd.f32 %v558, %v595
  %597 = vmatmul.f32.gmra.mxu0 %v58
  %v598 = vpop.f32.mrf.mxu0
  %v599 = vadd.f32 %v563, %v598
  %600 = vmatmul.f32.gmra.mxu0 %v61
  %v601 = vpop.f32.mrf.mxu0
  %v602 = vadd.f32 %v568, %v601
  %603 = vmatmul.f32.gmra.mxu0 %v64
  %v604 = vpop.f32.mrf.mxu0
  %v605 = vadd.f32 %v573, %v604
  %606 = vdwg.mxu0
  %v607 = vtanh.pop %v596
  %v608 = vtanh.pop %v599
  %v609 = vtanh.pop %v602
  %v610 = vtanh.pop %v605
  %611 = vmatpush.msra.mxu0 0.0
  %612 = vmatpush.msra.mxu0 0.0
  %613 = vmatpush.msra.mxu0 0.0
  %614 = vmatpush.msra.mxu0 0.0
  %615 = vmatpush.msra.mxu0 0.0
  %616 = vmatpush.msra.mxu0 0.0
  %617 = vmatpush.msra.mxu0 0.0
  %618 = vmatpush.msra.mxu0 0.0
  %619 = vmatpush.msra.mxu0 0.0
  %620 = vmatpush.msra.mxu0 0.0
  %621 = vmatpush.msra.mxu0 0.0
  %622 = vmatpush.msra.mxu0 0.0
  %623 = vmatpush.msra.mxu0 %v610
  %624 = vmatpush.msra.mxu0 %v609
  %625 = vmatpush.msra.mxu0 %v608
  %626 = vmatpush.msra.mxu0 %v607
  %627 = vmatmul.f32.gmra.mxu0 %v105
  %v628 = vpop.f32.mrf.mxu0
  %v629 = vadd.f32 0.0, %v628
  %630 = vdwg.mxu0
  %v631 = vmul.f32 %v629, %v25
  %v632 = vadd.f32 %v549, %v631
  %v633 = vadd.f32 %v632, %v27
  %s634 = scalar_lea.vmem %s3, 224
  %v635 = vld [vmem:[%s634] sm:$0xff]
  %v636 = vld [vmem:[%s634 + $0x8] sm:$0xff]
  %v637 = vld [vmem:[%s634 + $0x10] sm:$0xff]
  %v638 = vld [vmem:[%s634 + $0x18] sm:$0xff]
  %640 = vset.pattern.permute.xlu0 0
  %641 = vperm.xlu0 %640, %v635
  %v642 = vpop.permute.xlu0 %641
  %645 = vset.pattern.permute.xlu0 0
  %646 = vperm.xlu0 %645, %v636
  %v647 = vpop.permute.xlu0 %646
  %650 = vset.pattern.permute.xlu0 0
  %651 = vperm.xlu0 %650, %v637
  %v652 = vpop.permute.xlu0 %651
  %655 = vset.pattern.permute.xlu0 0
  %656 = vperm.xlu0 %655, %v638
  %v657 = vpop.permute.xlu0 %656
  %v660 = vsel %vm66, %v633, 0
  %662 = vmatpush.msra.mxu0 0.0
  %663 = vmatpush.msra.mxu0 0.0
  %664 = vmatpush.msra.mxu0 0.0
  %665 = vmatpush.msra.mxu0 0.0
  %666 = vmatpush.msra.mxu0 0.0
  %667 = vmatpush.msra.mxu0 0.0
  %668 = vmatpush.msra.mxu0 0.0
  %669 = vmatpush.msra.mxu0 0.0
  %670 = vmatpush.msra.mxu0 0.0
  %671 = vmatpush.msra.mxu0 0.0
  %672 = vmatpush.msra.mxu0 0.0
  %673 = vmatpush.msra.mxu0 0.0
  %674 = vmatpush.msra.mxu0 0.0
  %675 = vmatpush.msra.mxu0 0.0
  %676 = vmatpush.msra.mxu0 0.0
  %677 = vmatpush.msra.mxu0 %v660
  %678 = vmatmul.f32.gmra.mxu0 %v55
  %v679 = vpop.f32.mrf.mxu0
  %v680 = vadd.f32 %v642, %v679
  %681 = vmatmul.f32.gmra.mxu0 %v58
  %v682 = vpop.f32.mrf.mxu0
  %v683 = vadd.f32 %v647, %v682
  %684 = vmatmul.f32.gmra.mxu0 %v61
  %v685 = vpop.f32.mrf.mxu0
  %v686 = vadd.f32 %v652, %v685
  %687 = vmatmul.f32.gmra.mxu0 %v64
  %v688 = vpop.f32.mrf.mxu0
  %v689 = vadd.f32 %v657, %v688
  %690 = vdwg.mxu0
  %v691 = vtanh.pop %v680
  %v692 = vtanh.pop %v683
  %v693 = vtanh.pop %v686
  %v694 = vtanh.pop %v689
  %695 = vmatpush.msra.mxu0 0.0
  %696 = vmatpush.msra.mxu0 0.0
  %697 = vmatpush.msra.mxu0 0.0
  %698 = vmatpush.msra.mxu0 0.0
  %699 = vmatpush.msra.mxu0 0.0
  %700 = vmatpush.msra.mxu0 0.0
  %701 = vmatpush.msra.mxu0 0.0
  %702 = vmatpush.msra.mxu0 0.0
  %703 = vmatpush.msra.mxu0 0.0
  %704 = vmatpush.msra.mxu0 0.0
  %705 = vmatpush.msra.mxu0 0.0
  %706 = vmatpush.msra.mxu0 0.0
  %707 = vmatpush.msra.mxu0 %v694
  %708 = vmatpush.msra.mxu0 %v693
  %709 = vmatpush.msra.mxu0 %v692
  %710 = vmatpush.msra.mxu0 %v691
  %711 = vmatmul.f32.gmra.mxu0 %v105
  %v712 = vpop.f32.mrf.mxu0
  %v713 = vadd.f32 0.0, %v712
  %714 = vdwg.mxu0
  %v715 = vmul.f32 %v713, %v25
  %v716 = vadd.f32 %v633, %v715
  %v717 = vadd.f32 %v716, %v27
  %s718 = scalar_lea.vmem %s3, 256
  %v719 = vld [vmem:[%s718] sm:$0xff]
  %v720 = vld [vmem:[%s718 + $0x8] sm:$0xff]
  %v721 = vld [vmem:[%s718 + $0x10] sm:$0xff]
  %v722 = vld [vmem:[%s718 + $0x18] sm:$0xff]
  %724 = vset.pattern.permute.xlu0 0
  %725 = vperm.xlu0 %724, %v719
  %v726 = vpop.permute.xlu0 %725
  %729 = vset.pattern.permute.xlu0 0
  %730 = vperm.xlu0 %729, %v720
  %v731 = vpop.permute.xlu0 %730
  %734 = vset.pattern.permute.xlu0 0
  %735 = vperm.xlu0 %734, %v721
  %v736 = vpop.permute.xlu0 %735
  %739 = vset.pattern.permute.xlu0 0
  %740 = vperm.xlu0 %739, %v722
  %v741 = vpop.permute.xlu0 %740
  %v744 = vsel %vm66, %v717, 0
  %746 = vmatpush.msra.mxu0 0.0
  %747 = vmatpush.msra.mxu0 0.0
  %748 = vmatpush.msra.mxu0 0.0
  %749 = vmatpush.msra.mxu0 0.0
  %750 = vmatpush.msra.mxu0 0.0
  %751 = vmatpush.msra.mxu0 0.0
  %752 = vmatpush.msra.mxu0 0.0
  %753 = vmatpush.msra.mxu0 0.0
  %754 = vmatpush.msra.mxu0 0.0
  %755 = vmatpush.msra.mxu0 0.0
  %756 = vmatpush.msra.mxu0 0.0
  %757 = vmatpush.msra.mxu0 0.0
  %758 = vmatpush.msra.mxu0 0.0
  %759 = vmatpush.msra.mxu0 0.0
  %760 = vmatpush.msra.mxu0 0.0
  %761 = vmatpush.msra.mxu0 %v744
  %762 = vmatmul.f32.gmra.mxu0 %v55
  %v763 = vpop.f32.mrf.mxu0
  %v764 = vadd.f32 %v726, %v763
  %765 = vmatmul.f32.gmra.mxu0 %v58
  %v766 = vpop.f32.mrf.mxu0
  %v767 = vadd.f32 %v731, %v766
  %768 = vmatmul.f32.gmra.mxu0 %v61
  %v769 = vpop.f32.mrf.mxu0
  %v770 = vadd.f32 %v736, %v769
  %771 = vmatmul.f32.gmra.mxu0 %v64
  %v772 = vpop.f32.mrf.mxu0
  %v773 = vadd.f32 %v741, %v772
  %774 = vdwg.mxu0
  %v775 = vtanh.pop %v764
  %v776 = vtanh.pop %v767
  %v777 = vtanh.pop %v770
  %v778 = vtanh.pop %v773
  %779 = vmatpush.msra.mxu0 0.0
  %780 = vmatpush.msra.mxu0 0.0
  %781 = vmatpush.msra.mxu0 0.0
  %782 = vmatpush.msra.mxu0 0.0
  %783 = vmatpush.msra.mxu0 0.0
  %784 = vmatpush.msra.mxu0 0.0
  %785 = vmatpush.msra.mxu0 0.0
  %786 = vmatpush.msra.mxu0 0.0
  %787 = vmatpush.msra.mxu0 0.0
  %788 = vmatpush.msra.mxu0 0.0
  %789 = vmatpush.msra.mxu0 0.0
  %790 = vmatpush.msra.mxu0 0.0
  %791 = vmatpush.msra.mxu0 %v778
  %792 = vmatpush.msra.mxu0 %v777
  %793 = vmatpush.msra.mxu0 %v776
  %794 = vmatpush.msra.mxu0 %v775
  %795 = vmatmul.f32.gmra.mxu0 %v105
  %v796 = vpop.f32.mrf.mxu0
  %v797 = vadd.f32 0.0, %v796
  %798 = vdwg.mxu0
  %v799 = vmul.f32 %v797, %v25
  %v800 = vadd.f32 %v717, %v799
  %v801 = vadd.f32 %v800, %v27
  %802 = vst [vmem:[%s5] sm:$0x3f] %v801
  // Predicated region
  $region22: #{conditioned_ode_solve.1} parent=0 // pred_check
    _
  $region23: #{conditioned_ode_solve.1} parent=0 // pred_check_branch
    %804 = sbr.rel (0) target = $region25
  $region24: #{conditioned_ode_solve.1} parent=0 // pred_region
    _
  $region25: #{conditioned_ode_solve.1} parent=0 // pred_fallthru
    _
  // Predicated region
  $region26: #{conditioned_ode_solve.1} parent=0 // pred_check
    _
  $region27: #{conditioned_ode_solve.1} parent=0 // pred_check_branch
    %806 = sbr.rel (0) target = $region29
  $region28: #{conditioned_ode_solve.1} parent=0 // pred_region
    _
  $region29: #{conditioned_ode_solve.1} parent=0 // pred_fallthru
    _

</llo_original>
